<compile_context>
chip_gen: v5e
topology: v5e:2x2
jax: 0.10.0
libtpu: 0.0.40
codegen_flags: <defaults>
</compile_context>

<pallas_src>
import jax
import jax.numpy as jnp
from jax.experimental import pallas as pl
from jax.experimental.pallas import tpu as pltpu

NUM_CLASSES = 15
HIDDEN = 768
C_PAD = 128          # pad class axis to one full lane tile -> lane-dense stores
NEG_BIG = -1e30      # bias for padded classes -> exp underflows to exactly 0
TILE_B_MAX = 1024    # rows / grid step: f32 input block = 3 MiB; ~7.5 MiB total
                     # double-buffered -> fits the 16 MiB v5e scoped-VMEM default


def _round_up(x, m):
    return ((x + m - 1) // m) * m


def cls_head_kernel(x_ref, w_ref, b_ref, out_ref):
    """x_ref:  (TB, 768)  f32  CLS rows (column block 0 of the flattened input)
       w_ref:  (768, 128) bf16 classifier weight, class axis padded to 128
       b_ref:  (1, 128)   f32  bias; padded lanes are -1e30
       out_ref:(TB, 128)  f32  softmax probabilities (padded lanes come out 0)."""
    x = x_ref[...].astype(jnp.bfloat16)                       # cast at the MXU input
    logits = jnp.dot(x, w_ref[...],
                     preferred_element_type=jnp.float32)      # MXU, f32 accumulate
    logits = logits + b_ref[...]                              # padded lanes -> -1e30
    m = jnp.max(logits, axis=-1, keepdims=True)
    e = jnp.exp(logits - m)                                   # EUP
    s = jnp.sum(e, axis=-1, keepdims=True)
    out_ref[...] = (e * pl.reciprocal(s, approx=True)).astype(out_ref.dtype)


def classifier_head(last_hidden_state, w_pad, b_pad):
    """last_hidden_state: (B, S, 768) f32 -> (B, C_PAD) f32 softmax probs."""
    B, S, H = last_hidden_state.shape
    # Metadata-only flatten (contiguous trailing dims): no copy, lets the
    # BlockSpec grab only the CLS columns [0:768] of each row (strided DMA,
    # 3 KiB contiguous per row).
    x_flat = last_hidden_state.reshape(B, S * H)

    if B <= 16:
        tile_b = B                                            # single full block
    else:
        # >= 2 grid steps so the "parallel" axis can shard across v7x's 2 TCs,
        # capped so per-step VMEM stays inside the scoped default on v5e/v6e/v7x.
        tile_b = min(TILE_B_MAX, _round_up(pl.cdiv(B, 2), 16))
        tile_b = min(tile_b, B)
    grid_b = pl.cdiv(B, tile_b)   # ragged last block: Pallas masks OOB writes

    return pl.pallas_call(
        cls_head_kernel,
        out_shape=jax.ShapeDtypeStruct((B, C_PAD), jnp.float32),
        grid=(grid_b,),
        in_specs=[
            pl.BlockSpec((tile_b, HIDDEN), lambda i: (i, 0)),  # CLS column block only
            pl.BlockSpec((HIDDEN, C_PAD), lambda i: (0, 0)),   # weight resident
            pl.BlockSpec((1, C_PAD), lambda i: (0, 0)),        # bias resident
        ],
        out_specs=pl.BlockSpec((tile_b, C_PAD), lambda i: (i, 0)),
        compiler_params=pltpu.CompilerParams(
            dimension_semantics=("parallel",)),                # 2-TC sharding on v7x
    )(x_flat, w_pad, b_pad)


def prepare_classifier_params(fc_w, fc_b):
    """One-time parameter prep (hoisted out of the forward): transpose,
    pad class axis 15 -> 128 (zero weight cols, -1e30 bias lanes), bf16 weight."""
    w_pad = jnp.pad(fc_w.T, ((0, 0), (0, C_PAD - NUM_CLASSES))).astype(jnp.bfloat16)
    b_pad = jnp.pad(fc_b.reshape(1, NUM_CLASSES),
                    ((0, 0), (0, C_PAD - NUM_CLASSES)),
                    constant_values=NEG_BIG).astype(jnp.float32)
    return w_pad, b_pad


@jax.jit
def model_forward(input_ids, attention_mask, token_type_ids,
                  last_hidden_state, w_pad, b_pad):
    # TODO(synk): the pretrained BertModel backbone (chinese-roberta-wwm-ext) has no
    # clean self-contained Pallas equivalent; last_hidden_state stands in for its output.
    del input_ids, attention_mask, token_type_ids
    probs = classifier_head(last_hidden_state, w_pad, b_pad)
    return probs[:, :NUM_CLASSES]


if __name__ == "__main__":
    B, S = 2, 8
    key = jax.random.PRNGKey(0)
    k_hid, k_w, k_b, k_ids = jax.random.split(key, 4)

    # Synthetic "BERT output" and token inputs (deterministic).
    last_hidden_state = jax.random.normal(k_hid, (B, S, HIDDEN), dtype=jnp.float32)
    input_ids = jax.random.randint(k_ids, (B, S), 0, 21128, dtype=jnp.int32)
    attention_mask = jnp.ones((B, S), dtype=jnp.int32)
    token_type_ids = jnp.zeros((B, S), dtype=jnp.int32)

    # Deterministic classifier parameters (torch nn.Linear(768, 15) shapes).
    fc_w = 0.02 * jax.random.normal(k_w, (NUM_CLASSES, HIDDEN), dtype=jnp.float32)
    fc_b = 0.02 * jax.random.normal(k_b, (NUM_CLASSES,), dtype=jnp.float32)

    # Hoisted, one-time weight/bias preparation.
    w_pad, b_pad = prepare_classifier_params(fc_w, fc_b)

    out = model_forward(input_ids, attention_mask, token_type_ids,
                        last_hidden_state, w_pad, b_pad)
    out = jax.block_until_ready(out)

    # Reference (plain JAX) using the same bf16-rounded operands the kernel sees.
    x_ref = last_hidden_state[:, 0].astype(jnp.bfloat16).astype(jnp.float32)
    w_ref = fc_w.astype(jnp.bfloat16).astype(jnp.float32)
    ref = jax.nn.softmax(x_ref @ w_ref.T + fc_b, axis=1)

    assert out.shape == (B, NUM_CLASSES)
    assert jnp.allclose(out, ref, atol=5e-3, rtol=0)
    assert jnp.allclose(jnp.sum(out, axis=1), 1.0, atol=5e-3)

    print("KERNEL_OK")
</pallas_src>

<mosaic_0001>
module attributes {stable_mosaic.version = 11 : i64} {
  func.func @cls_head_kernel(%arg0: i32, %arg1: memref<2x768xf32, #tpu.memory_space<vmem>>, %arg2: memref<768x128xbf16, #tpu.memory_space<vmem>>, %arg3: memref<1x128xf32, #tpu.memory_space<vmem>>, %arg4: memref<2x128xf32, #tpu.memory_space<vmem>>) attributes {dimension_semantics = [#tpu.dimension_semantics<parallel>], iteration_bounds = array<i64: 1>, scalar_prefetch = 0 : i64, scratch_operands = 0 : i64, tpu.core_type = #tpu.core_type<tc>, window_params = [{transform_indices = @transform_0, window_bounds = array<i64: 2, 768>}, {pipeline_mode = #tpu.pipeline_mode<synchronous>, transform_indices = @transform_1, window_bounds = array<i64: 768, 128>}, {pipeline_mode = #tpu.pipeline_mode<synchronous>, transform_indices = @transform_2, window_bounds = array<i64: 1, 128>}, {transform_indices = @transform_3, window_bounds = array<i64: 2, 128>}]} {
    %c0 = arith.constant 0 : index
    %c0_0 = arith.constant 0 : index
    %0 = vector.load %arg1[%c0, %c0_0] : memref<2x768xf32, #tpu.memory_space<vmem>>, vector<2x768xf32>
    %1 = arith.truncf %0 : vector<2x768xf32> to vector<2x768xbf16>
    %c0_1 = arith.constant 0 : index
    %c0_2 = arith.constant 0 : index
    %2 = vector.load %arg2[%c0_1, %c0_2] : memref<768x128xbf16, #tpu.memory_space<vmem>>, vector<768x128xbf16>
    %cst = arith.constant dense<0.000000e+00> : vector<2x128xf32>
    %3 = tpu.matmul %1, %2, %cst {dimension_numbers = #tpu.dot_dimension_numbers<[1], [0], [0], [1], [0, 0, 1, 1], [], []>} : vector<2x768xbf16>, vector<768x128xbf16>, vector<2x128xf32> -> vector<2x128xf32>
    %c0_3 = arith.constant 0 : index
    %c0_4 = arith.constant 0 : index
    %4 = vector.load %arg3[%c0_3, %c0_4] : memref<1x128xf32, #tpu.memory_space<vmem>>, vector<1x128xf32>
    %5 = vector.broadcast %4 : vector<1x128xf32> to vector<2x128xf32>
    %6 = arith.addf %3, %5 : vector<2x128xf32>
    %cst_5 = arith.constant dense<0xFF800000> : vector<2xf32>
    %7 = vector.multi_reduction <maximumf>, %6, %cst_5 [1] : vector<2x128xf32> to vector<2xf32>
    %8 = vector.shape_cast %7 : vector<2xf32> to vector<2x1xf32>
    %9 = vector.broadcast %8 : vector<2x1xf32> to vector<2x128xf32>
    %10 = arith.subf %6, %9 : vector<2x128xf32>
    %11 = math.exp %10 : vector<2x128xf32>
    %cst_6 = arith.constant dense<0.000000e+00> : vector<2xf32>
    %12 = vector.multi_reduction <add>, %11, %cst_6 [1] : vector<2x128xf32> to vector<2xf32>
    %13 = vector.shape_cast %12 : vector<2xf32> to vector<2x1xf32>
    %14 = tpu.reciprocal %13 {approx = true} : vector<2x1xf32> -> vector<2x1xf32>
    %15 = vector.broadcast %14 : vector<2x1xf32> to vector<2x128xf32>
    %16 = arith.mulf %11, %15 : vector<2x128xf32>
    %c0_7 = arith.constant 0 : index
    %c0_8 = arith.constant 0 : index
    %17 = vector.load %arg4[%c0_7, %c0_8] : memref<2x128xf32, #tpu.memory_space<vmem>>, vector<2x128xf32>
    tpu.vector_store %arg4[%c0_7, %c0_8], %16 {strides = array<i32>} : memref<2x128xf32, #tpu.memory_space<vmem>>, vector<2x128xf32>,
    return
  }
  func.func @transform_0(%arg0: i32) -> (i32, i32) {
    %c0_i32 = arith.constant 0 : i32
    %c0_i32_0 = arith.constant 0 : i32
    return %arg0, %c0_i32 : i32, i32
  }
  func.func @transform_1(%arg0: i32) -> (i32, i32) {
    %c0_i32 = arith.constant 0 : i32
    %c0_i32_0 = arith.constant 0 : i32
    %c0_i32_1 = arith.constant 0 : i32
    return %c0_i32, %c0_i32_0 : i32, i32
  }
  func.func @transform_2(%arg0: i32) -> (i32, i32) {
    %c0_i32 = arith.constant 0 : i32
    %c0_i32_0 = arith.constant 0 : i32
    %c0_i32_1 = arith.constant 0 : i32
    return %c0_i32, %c0_i32_0 : i32, i32
  }
  func.func @transform_3(%arg0: i32) -> (i32, i32) {
    %c0_i32 = arith.constant 0 : i32
    %c0_i32_0 = arith.constant 0 : i32
    return %arg0, %c0_i32 : i32, i32
  }
}

</mosaic_0001>

<llo_original>
// kernel: model_forward.1
$region0: #{model_forward.1}
  #allocation0 [shape = 'u32[]', space=smem, size = 0x4, offset = 0x4, fixed_abs, tag = 'smem constant byte address 0x4 - core index']
  #allocation1 [shape = 'u32[72,128]{1,0:T(1,128)}', space=vmem, size = 0x9000, scoped, tag = 'internal scratch']
  %s0 = inlined_call_operand.vmem [shape: f32[2,6144], index: 0, kind: input, shape index: {}]
  %s1 = inlined_call_operand.hbm [shape: bf16[768,128], index: 1, kind: input, shape index: {}]
  %s2 = inlined_call_operand.vmem [shape: f32[1,128], index: 2, kind: input, shape index: {}]
  %s3 = inlined_call_operand.hbm [shape: f32[2,128], index: 3, kind: output, shape index: {}]
  %s4 = sld [smem:[#allocation0]]
  $region26: #{model_forward.1} parent=0
    _
  %s6 = ssub.s32 1, %s4
  %s7 = scalar_select 0, %s6, %s4
  $region1: #{model_forward.1} parent=0
    #allocation2 [shape = 'u8[196608]{0}', space=vmem, size = 0x30000, scoped, tag = 'input window, operand 1, single buffered']
    #allocation3 [shape = 's32[1]{0}', space=sflag, size = 0x4, scoped, tag = 'scoped memory for model_forward.1']
    #allocation4 [shape = 's32[1]{0}', space=sflag, size = 0x4, scoped, tag = 'scoped memory for model_forward.1']
    #allocation5 [shape = 'u8[1024]{0}', space=vmem, size = 0x400, scoped, tag = 'output window, operand 0, single buffered']
    %8 = vsyncpa [#allocation3], 0
    %9 = vsyncpa [#allocation4], 0
    // Predicated region
    $region2: #{model_forward.1} parent=1 // pred_check
      _
    $region3: #{model_forward.1} parent=1 // pred_check_branch
      %11 = sbr.rel (0) target = $region5
    $region4: #{model_forward.1} parent=1 // pred_region
      _
    $region5: #{model_forward.1} parent=1 // pred_fallthru
      _
    // Predicated region
    $region6: #{model_forward.1} parent=1 // pred_check
      _
    $region7: #{model_forward.1} parent=1 // pred_check_branch
      %13 = sbr.rel (0) target = $region9
    $region8: #{model_forward.1} parent=1 // pred_region
      %15 = vsyncadd [#allocation3], 0
      %s16 = sshll.u32 %s1, 4
      %s17 = int_to_ptr.hbm [resolvable:$true] %s16
      %s18 = sshll.u32 [#allocation2], 4
      %s19 = int_to_ptr.vmem [resolvable:$true] %s18
      %24 = dma.hbm_to_vmem [thread:$0]  %s17, 6144, %s19, [#allocation3], 64, 64, 4
    $region9: #{model_forward.1} parent=1 // pred_fallthru
      _
    // Predicated region
    $region10: #{model_forward.1} parent=1 // pred_check
      _
    $region11: #{model_forward.1} parent=1 // pred_check_branch
      %26 = sbr.rel (0) target = $region13
    $region12: #{model_forward.1} parent=1 // pred_region
      _
    $region13: #{model_forward.1} parent=1 // pred_fallthru
      _
    // Predicated region
    $region14: #{model_forward.1} parent=1 // pred_check
      _
    $region15: #{model_forward.1} parent=1 // pred_check_branch
      %28 = sbr.rel (0) target = $region17
    $region16: #{model_forward.1} parent=1 // pred_region
      %30 = dma.done [#allocation3], 6144
    $region17: #{model_forward.1} parent=1 // pred_fallthru
      _
    %v31 = vld [vmem:[%s0] sm:$0xff]
    %v32 = vld [vmem:[%s0 + $0x8] sm:$0xf]
    %35 = vst [vmem:[#allocation1] ss:$4 sm:$0xff] %v31
    %s36 = scalar_lea.vmem [#allocation1], 32
    %37 = vst [vmem:[%s36] ss:$4 sm:$0xff] %v32
    %v38 = vld.sshfl [vmem:[#allocation1] sm:$0xff pattern:$0x73625140]
    %v39 = vld.sshfl [vmem:[#allocation1 + $0x8] sm:$0xff pattern:$0x73625140]
    %v40 = vld.sshfl [vmem:[#allocation1 + $0x10] sm:$0xff pattern:$0x73625140]
    %v41 = vld.sshfl [vmem:[#allocation1 + $0x18] sm:$0xff pattern:$0x73625140]
    %v42 = vld.sshfl [vmem:[#allocation1 + $0x20] sm:$0xff pattern:$0x73625140]
    %v43 = vld.sshfl [vmem:[#allocation1 + $0x28] sm:$0xff pattern:$0x73625140]
    %v50 = vpack.c.bf16 %v38, %v38
    %v51 = vpack.c.bf16 %v39, %v39
    %v52 = vpack.c.bf16 %v40, %v40
    %v53 = vpack.c.bf16 %v41, %v41
    %v54 = vpack.c.bf16 %v42, %v42
    %v55 = vpack.c.bf16 %v43, %v43
    %v56 = vld [vmem:[#allocation2] sm:$0xf]
    %v57 = vld [vmem:[#allocation2 + $0x4] sm:$0xf]
    %v58 = vld [vmem:[#allocation2 + $0x8] sm:$0xf]
    %v59 = vld [vmem:[#allocation2 + $0xc] sm:$0xf]
    %v60 = vld [vmem:[#allocation2 + $0x10] sm:$0xf]
    %v61 = vld [vmem:[#allocation2 + $0x14] sm:$0xf]
    %v62 = vld [vmem:[#allocation2 + $0x18] sm:$0xf]
    %v63 = vld [vmem:[#allocation2 + $0x1c] sm:$0xf]
    %v64 = vld [vmem:[#allocation2 + $0x20] sm:$0xf]
    %v65 = vld [vmem:[#allocation2 + $0x24] sm:$0xf]
    %v66 = vld [vmem:[#allocation2 + $0x28] sm:$0xf]
    %v67 = vld [vmem:[#allocation2 + $0x2c] sm:$0xf]
    %v68 = vld [vmem:[#allocation2 + $0x30] sm:$0xf]
    %v69 = vld [vmem:[#allocation2 + $0x34] sm:$0xf]
    %v70 = vld [vmem:[#allocation2 + $0x38] sm:$0xf]
    %v71 = vld [vmem:[#allocation2 + $0x3c] sm:$0xf]
    %v72 = vld [vmem:[#allocation2 + $0x40] sm:$0xf]
    %v73 = vld [vmem:[#allocation2 + $0x44] sm:$0xf]
    %v74 = vld [vmem:[#allocation2 + $0x48] sm:$0xf]
    %v75 = vld [vmem:[#allocation2 + $0x4c] sm:$0xf]
    %v76 = vld [vmem:[#allocation2 + $0x50] sm:$0xf]
    %v77 = vld [vmem:[#allocation2 + $0x54] sm:$0xf]
    %v78 = vld [vmem:[#allocation2 + $0x58] sm:$0xf]
    %v79 = vld [vmem:[#allocation2 + $0x5c] sm:$0xf]
    %v80 = vld [vmem:[#allocation2 + $0x60] sm:$0xf]
    %v81 = vld [vmem:[#allocation2 + $0x64] sm:$0xf]
    %v82 = vld [vmem:[#allocation2 + $0x68] sm:$0xf]
    %v83 = vld [vmem:[#allocation2 + $0x6c] sm:$0xf]
    %v84 = vld [vmem:[#allocation2 + $0x70] sm:$0xf]
    %v85 = vld [vmem:[#allocation2 + $0x74] sm:$0xf]
    %v86 = vld [vmem:[#allocation2 + $0x78] sm:$0xf]
    %v87 = vld [vmem:[#allocation2 + $0x7c] sm:$0xf]
    %v88 = vld [vmem:[#allocation2 + $0x80] sm:$0xf]
    %v89 = vld [vmem:[#allocation2 + $0x84] sm:$0xf]
    %v90 = vld [vmem:[#allocation2 + $0x88] sm:$0xf]
    %v91 = vld [vmem:[#allocation2 + $0x8c] sm:$0xf]
    %v92 = vld [vmem:[#allocation2 + $0x90] sm:$0xf]
    %v93 = vld [vmem:[#allocation2 + $0x94] sm:$0xf]
    %v94 = vld [vmem:[#allocation2 + $0x98] sm:$0xf]
    %v95 = vld [vmem:[#allocation2 + $0x9c] sm:$0xf]
    %v96 = vld [vmem:[#allocation2 + $0xa0] sm:$0xf]
    %v97 = vld [vmem:[#allocation2 + $0xa4] sm:$0xf]
    %v98 = vld [vmem:[#allocation2 + $0xa8] sm:$0xf]
    %v99 = vld [vmem:[#allocation2 + $0xac] sm:$0xf]
    %v100 = vld [vmem:[#allocation2 + $0xb0] sm:$0xf]
    %v101 = vld [vmem:[#allocation2 + $0xb4] sm:$0xf]
    %v102 = vld [vmem:[#allocation2 + $0xb8] sm:$0xf]
    %v103 = vld [vmem:[#allocation2 + $0xbc] sm:$0xf]
    %v104 = vld [vmem:[#allocation2 + $0xc0] sm:$0xf]
    %v105 = vld [vmem:[#allocation2 + $0xc4] sm:$0xf]
    %v106 = vld [vmem:[#allocation2 + $0xc8] sm:$0xf]
    %v107 = vld [vmem:[#allocation2 + $0xcc] sm:$0xf]
    %v108 = vld [vmem:[#allocation2 + $0xd0] sm:$0xf]
    %v109 = vld [vmem:[#allocation2 + $0xd4] sm:$0xf]
    %v110 = vld [vmem:[#allocation2 + $0xd8] sm:$0xf]
    %v111 = vld [vmem:[#allocation2 + $0xdc] sm:$0xf]
    %v112 = vld [vmem:[#allocation2 + $0xe0] sm:$0xf]
    %v113 = vld [vmem:[#allocation2 + $0xe4] sm:$0xf]
    %v114 = vld [vmem:[#allocation2 + $0xe8] sm:$0xf]
    %v115 = vld [vmem:[#allocation2 + $0xec] sm:$0xf]
    %v116 = vld [vmem:[#allocation2 + $0xf0] sm:$0xf]
    %v117 = vld [vmem:[#allocation2 + $0xf4] sm:$0xf]
    %v118 = vld [vmem:[#allocation2 + $0xf8] sm:$0xf]
    %v119 = vld [vmem:[#allocation2 + $0xfc] sm:$0xf]
    %v120 = vld [vmem:[#allocation2 + $0x100] sm:$0xf]
    %v121 = vld [vmem:[#allocation2 + $0x104] sm:$0xf]
    %v122 = vld [vmem:[#allocation2 + $0x108] sm:$0xf]
    %v123 = vld [vmem:[#allocation2 + $0x10c] sm:$0xf]
    %v124 = vld [vmem:[#allocation2 + $0x110] sm:$0xf]
    %v125 = vld [vmem:[#allocation2 + $0x114] sm:$0xf]
    %v126 = vld [vmem:[#allocation2 + $0x118] sm:$0xf]
    %v127 = vld [vmem:[#allocation2 + $0x11c] sm:$0xf]
    %v128 = vld [vmem:[#allocation2 + $0x120] sm:$0xf]
    %v129 = vld [vmem:[#allocation2 + $0x124] sm:$0xf]
    %v130 = vld [vmem:[#allocation2 + $0x128] sm:$0xf]
    %v131 = vld [vmem:[#allocation2 + $0x12c] sm:$0xf]
    %v132 = vld [vmem:[#allocation2 + $0x130] sm:$0xf]
    %v133 = vld [vmem:[#allocation2 + $0x134] sm:$0xf]
    %v134 = vld [vmem:[#allocation2 + $0x138] sm:$0xf]
    %v135 = vld [vmem:[#allocation2 + $0x13c] sm:$0xf]
    %v136 = vld [vmem:[#allocation2 + $0x140] sm:$0xf]
    %v137 = vld [vmem:[#allocation2 + $0x144] sm:$0xf]
    %v138 = vld [vmem:[#allocation2 + $0x148] sm:$0xf]
    %v139 = vld [vmem:[#allocation2 + $0x14c] sm:$0xf]
    %v140 = vld [vmem:[#allocation2 + $0x150] sm:$0xf]
    %v141 = vld [vmem:[#allocation2 + $0x154] sm:$0xf]
    %v142 = vld [vmem:[#allocation2 + $0x158] sm:$0xf]
    %v143 = vld [vmem:[#allocation2 + $0x15c] sm:$0xf]
    %v144 = vld [vmem:[#allocation2 + $0x160] sm:$0xf]
    %v145 = vld [vmem:[#allocation2 + $0x164] sm:$0xf]
    %v146 = vld [vmem:[#allocation2 + $0x168] sm:$0xf]
    %v147 = vld [vmem:[#allocation2 + $0x16c] sm:$0xf]
    %v148 = vld [vmem:[#allocation2 + $0x170] sm:$0xf]
    %v149 = vld [vmem:[#allocation2 + $0x174] sm:$0xf]
    %v150 = vld [vmem:[#allocation2 + $0x178] sm:$0xf]
    %v151 = vld [vmem:[#allocation2 + $0x17c] sm:$0xf]
    %v152 = vld [vmem:[%s2] sm:$0x1]
    %v154 = vperm.slane %v152, 0
    %v252 = vunpack.c.l.b16 %v56
    %v253 = vunpack.c.l.b16 %v57
    %v254 = vunpack.c.l.b16 %v58
    %v255 = vunpack.c.l.b16 %v59
    %v256 = vunpack.c.l.b16 %v60
    %v257 = vunpack.c.l.b16 %v61
    %v258 = vunpack.c.l.b16 %v62
    %v259 = vunpack.c.l.b16 %v63
    %v260 = vunpack.c.l.b16 %v64
    %v261 = vunpack.c.l.b16 %v65
    %v262 = vunpack.c.l.b16 %v66
    %v263 = vunpack.c.l.b16 %v67
    %v264 = vunpack.c.l.b16 %v68
    %v265 = vunpack.c.l.b16 %v69
    %v266 = vunpack.c.l.b16 %v70
    %v267 = vunpack.c.l.b16 %v71
    %v268 = vunpack.c.l.b16 %v72
    %v269 = vunpack.c.l.b16 %v73
    %v270 = vunpack.c.l.b16 %v74
    %v271 = vunpack.c.l.b16 %v75
    %v272 = vunpack.c.l.b16 %v76
    %v273 = vunpack.c.l.b16 %v77
    %v274 = vunpack.c.l.b16 %v78
    %v275 = vunpack.c.l.b16 %v79
    %v276 = vunpack.c.l.b16 %v80
    %v277 = vunpack.c.l.b16 %v81
    %v278 = vunpack.c.l.b16 %v82
    %v279 = vunpack.c.l.b16 %v83
    %v280 = vunpack.c.l.b16 %v84
    %v281 = vunpack.c.l.b16 %v85
    %v282 = vunpack.c.l.b16 %v86
    %v283 = vunpack.c.l.b16 %v87
    %v284 = vunpack.c.l.b16 %v88
    %v285 = vunpack.c.l.b16 %v89
    %v286 = vunpack.c.l.b16 %v90
    %v287 = vunpack.c.l.b16 %v91
    %v288 = vunpack.c.l.b16 %v92
    %v289 = vunpack.c.l.b16 %v93
    %v290 = vunpack.c.l.b16 %v94
    %v291 = vunpack.c.l.b16 %v95
    %v292 = vunpack.c.l.b16 %v96
    %v293 = vunpack.c.l.b16 %v97
    %v294 = vunpack.c.l.b16 %v98
    %v295 = vunpack.c.l.b16 %v99
    %v296 = vunpack.c.l.b16 %v100
    %v297 = vunpack.c.l.b16 %v101
    %v298 = vunpack.c.l.b16 %v102
    %v299 = vunpack.c.l.b16 %v103
    %v300 = vunpack.c.l.b16 %v104
    %v301 = vunpack.c.l.b16 %v105
    %v302 = vunpack.c.l.b16 %v106
    %v303 = vunpack.c.l.b16 %v107
    %v304 = vunpack.c.l.b16 %v108
    %v305 = vunpack.c.l.b16 %v109
    %v306 = vunpack.c.l.b16 %v110
    %v307 = vunpack.c.l.b16 %v111
    %v308 = vunpack.c.l.b16 %v112
    %v309 = vunpack.c.l.b16 %v113
    %v310 = vunpack.c.l.b16 %v114
    %v311 = vunpack.c.l.b16 %v115
    %v312 = vunpack.c.l.b16 %v116
    %v313 = vunpack.c.l.b16 %v117
    %v314 = vunpack.c.l.b16 %v118
    %v315 = vunpack.c.l.b16 %v119
    %v316 = vunpack.c.l.b16 %v120
    %v317 = vunpack.c.l.b16 %v121
    %v318 = vunpack.c.l.b16 %v122
    %v319 = vunpack.c.l.b16 %v123
    %v320 = vunpack.c.l.b16 %v124
    %v321 = vunpack.c.l.b16 %v125
    %v322 = vunpack.c.l.b16 %v126
    %v323 = vunpack.c.l.b16 %v127
    %v324 = vunpack.c.l.b16 %v128
    %v325 = vunpack.c.l.b16 %v129
    %v326 = vunpack.c.l.b16 %v130
    %v327 = vunpack.c.l.b16 %v131
    %v328 = vunpack.c.l.b16 %v132
    %v329 = vunpack.c.l.b16 %v133
    %v330 = vunpack.c.l.b16 %v134
    %v331 = vunpack.c.l.b16 %v135
    %v332 = vunpack.c.l.b16 %v136
    %v333 = vunpack.c.l.b16 %v137
    %v334 = vunpack.c.l.b16 %v138
    %v335 = vunpack.c.l.b16 %v139
    %v336 = vunpack.c.l.b16 %v140
    %v337 = vunpack.c.l.b16 %v141
    %v338 = vunpack.c.l.b16 %v142
    %v339 = vunpack.c.l.b16 %v143
    %v340 = vunpack.c.l.b16 %v144
    %v341 = vunpack.c.l.b16 %v145
    %v342 = vunpack.c.l.b16 %v146
    %v343 = vunpack.c.l.b16 %v147
    %v344 = vunpack.c.l.b16 %v148
    %v345 = vunpack.c.l.b16 %v149
    %v346 = vunpack.c.l.b16 %v150
    %v347 = vunpack.c.l.b16 %v151
    %v348 = vpack.c.b16 %v253, %v252
    %v349 = vpack.c.b16 %v255, %v254
    %v350 = vpack.c.b16 %v257, %v256
    %v351 = vpack.c.b16 %v259, %v258
    %v352 = vpack.c.b16 %v261, %v260
    %v353 = vpack.c.b16 %v263, %v262
    %v354 = vpack.c.b16 %v265, %v264
    %v355 = vpack.c.b16 %v267, %v266
    %v356 = vpack.c.b16 %v269, %v268
    %v357 = vpack.c.b16 %v271, %v270
    %v358 = vpack.c.b16 %v273, %v272
    %v359 = vpack.c.b16 %v275, %v274
    %v360 = vpack.c.b16 %v277, %v276
    %v361 = vpack.c.b16 %v279, %v278
    %v362 = vpack.c.b16 %v281, %v280
    %v363 = vpack.c.b16 %v283, %v282
    %v364 = vpack.c.b16 %v285, %v284
    %v365 = vpack.c.b16 %v287, %v286
    %v366 = vpack.c.b16 %v289, %v288
    %v367 = vpack.c.b16 %v291, %v290
    %v368 = vpack.c.b16 %v293, %v292
    %v369 = vpack.c.b16 %v295, %v294
    %v370 = vpack.c.b16 %v297, %v296
    %v371 = vpack.c.b16 %v299, %v298
    %v372 = vpack.c.b16 %v301, %v300
    %v373 = vpack.c.b16 %v303, %v302
    %v374 = vpack.c.b16 %v305, %v304
    %v375 = vpack.c.b16 %v307, %v306
    %v376 = vpack.c.b16 %v309, %v308
    %v377 = vpack.c.b16 %v311, %v310
    %v378 = vpack.c.b16 %v313, %v312
    %v379 = vpack.c.b16 %v315, %v314
    %v380 = vpack.c.b16 %v317, %v316
    %v381 = vpack.c.b16 %v319, %v318
    %v382 = vpack.c.b16 %v321, %v320
    %v383 = vpack.c.b16 %v323, %v322
    %v384 = vpack.c.b16 %v325, %v324
    %v385 = vpack.c.b16 %v327, %v326
    %v386 = vpack.c.b16 %v329, %v328
    %v387 = vpack.c.b16 %v331, %v330
    %v388 = vpack.c.b16 %v333, %v332
    %v389 = vpack.c.b16 %v335, %v334
    %v390 = vpack.c.b16 %v337, %v336
    %v391 = vpack.c.b16 %v339, %v338
    %v392 = vpack.c.b16 %v341, %v340
    %v393 = vpack.c.b16 %v343, %v342
    %v394 = vpack.c.b16 %v345, %v344
    %v395 = vpack.c.b16 %v347, %v346
    %444 = vmatpush.bf16.msra.mxu0 %v355
    %445 = vmatpush.bf16.msra.mxu0 %v354
    %446 = vmatpush.bf16.msra.mxu0 %v353
    %447 = vmatpush.bf16.msra.mxu0 %v352
    %448 = vmatpush.bf16.msra.mxu0 %v351
    %449 = vmatpush.bf16.msra.mxu0 %v350
    %450 = vmatpush.bf16.msra.mxu0 %v349
    %451 = vmatpush.bf16.msra.mxu0 %v348
    %452 = vmatmul.bf16.gmra.mxu0 %v50
    %v453 = vpop.f32.mrf.mxu0
    %v454 = vadd.f32 %v154, %v453
    %v455 = vpop.f32.mrf.mxu0
    %456 = vdwg.mxu0
    %457 = vmatpush.bf16.msra.mxu0 %v363
    %458 = vmatpush.bf16.msra.mxu0 %v362
    %459 = vmatpush.bf16.msra.mxu0 %v361
    %460 = vmatpush.bf16.msra.mxu0 %v360
    %461 = vmatpush.bf16.msra.mxu0 %v359
    %462 = vmatpush.bf16.msra.mxu0 %v358
    %463 = vmatpush.bf16.msra.mxu0 %v357
    %464 = vmatpush.bf16.msra.mxu0 %v356
    %465 = vmatmul.bf16.gmra.mxu0 %v51
    %v466 = vpop.f32.mrf.mxu0
    %v467 = vadd.f32 %v454, %v466
    %v468 = vpop.f32.mrf.mxu0
    %469 = vdwg.mxu0
    %470 = vmatpush.bf16.msra.mxu0 %v371
    %471 = vmatpush.bf16.msra.mxu0 %v370
    %472 = vmatpush.bf16.msra.mxu0 %v369
    %473 = vmatpush.bf16.msra.mxu0 %v368
    %474 = vmatpush.bf16.msra.mxu0 %v367
    %475 = vmatpush.bf16.msra.mxu0 %v366
    %476 = vmatpush.bf16.msra.mxu0 %v365
    %477 = vmatpush.bf16.msra.mxu0 %v364
    %478 = vmatmul.bf16.gmra.mxu0 %v52
    %v479 = vpop.f32.mrf.mxu0
    %v480 = vadd.f32 %v467, %v479
    %v481 = vpop.f32.mrf.mxu0
    %482 = vdwg.mxu0
    %483 = vmatpush.bf16.msra.mxu0 %v379
    %484 = vmatpush.bf16.msra.mxu0 %v378
    %485 = vmatpush.bf16.msra.mxu0 %v377
    %486 = vmatpush.bf16.msra.mxu0 %v376
    %487 = vmatpush.bf16.msra.mxu0 %v375
    %488 = vmatpush.bf16.msra.mxu0 %v374
    %489 = vmatpush.bf16.msra.mxu0 %v373
    %490 = vmatpush.bf16.msra.mxu0 %v372
    %491 = vmatmul.bf16.gmra.mxu0 %v53
    %v492 = vpop.f32.mrf.mxu0
    %v493 = vadd.f32 %v480, %v492
    %v494 = vpop.f32.mrf.mxu0
    %495 = vdwg.mxu0
    %496 = vmatpush.bf16.msra.mxu0 %v387
    %497 = vmatpush.bf16.msra.mxu0 %v386
    %498 = vmatpush.bf16.msra.mxu0 %v385
    %499 = vmatpush.bf16.msra.mxu0 %v384
    %500 = vmatpush.bf16.msra.mxu0 %v383
    %501 = vmatpush.bf16.msra.mxu0 %v382
    %502 = vmatpush.bf16.msra.mxu0 %v381
    %503 = vmatpush.bf16.msra.mxu0 %v380
    %504 = vmatmul.bf16.gmra.mxu0 %v54
    %v505 = vpop.f32.mrf.mxu0
    %v506 = vadd.f32 %v493, %v505
    %v507 = vpop.f32.mrf.mxu0
    %508 = vdwg.mxu0
    %509 = vmatpush.bf16.msra.mxu0 %v395
    %510 = vmatpush.bf16.msra.mxu0 %v394
    %511 = vmatpush.bf16.msra.mxu0 %v393
    %512 = vmatpush.bf16.msra.mxu0 %v392
    %513 = vmatpush.bf16.msra.mxu0 %v391
    %514 = vmatpush.bf16.msra.mxu0 %v390
    %515 = vmatpush.bf16.msra.mxu0 %v389
    %516 = vmatpush.bf16.msra.mxu0 %v388
    %517 = vmatmul.bf16.gmra.mxu0 %v55
    %v518 = vpop.f32.mrf.mxu0
    %v519 = vadd.f32 %v506, %v518
    %v520 = vpop.f32.mrf.mxu0
    %521 = vdwg.mxu0
    %vm522 = vcmask 1041408
    %v523 = vsel %vm522, %v519, -inf
    %524 = vmax.xlane.f32.xlu0 %v523
    %v525 = vpop.xlane.xlu0 %524
    %v526 = vsub.f32 %v519, %v525
    %v527 = vmul.f32 %v526, 1.442695
    %v528 = vpow.pop %v527
    %v529 = vsel %vm522, %v528, 0.0
    %530 = vadd.xlane.f32.xlu0 %v529
    %v531 = vpop.xlane.xlu0 %530
    %v532 = vrcp.pop %v531
    %v533 = vmul.f32 %v528, %v532
    %534 = vst [vmem:[#allocation5] sm:$0x3] %v533
    // Predicated region
    $region18: #{model_forward.1} parent=1 // pred_check
      _
    $region19: #{model_forward.1} parent=1 // pred_check_branch
      %536 = sbr.rel (0) target = $region21
    $region20: #{model_forward.1} parent=1 // pred_region
      %538 = vsyncadd [#allocation4], 0
      %s540 = sshll.u32 [#allocation5], 4
      %s541 = int_to_ptr.vmem [resolvable:$true] %s540
      %s542 = sshll.u32 %s3, 4
      %s543 = int_to_ptr.hbm [resolvable:$true] %s542
      %545 = dma.vmem_to_hbm [thread:$0]  %s541, 32, %s543, [#allocation4]
    $region21: #{model_forward.1} parent=1 // pred_fallthru
      _
    // Predicated region
    $region22: #{model_forward.1} parent=1 // pred_check
      _
    $region23: #{model_forward.1} parent=1 // pred_check_branch
      %547 = sbr.rel (0) target = $region25
    $region24: #{model_forward.1} parent=1 // pred_region
      %549 = dma.done [#allocation4], 32
    $region25: #{model_forward.1} parent=1 // pred_fallthru
      _
    %550 = vsyncpa [#allocation3], 1
    %551 = vsyncpa [#allocation4], 1

</llo_original>
